<compile_context>
chip_gen: v5e
topology: v5e:2x2
jax: 0.10.0
libtpu: 0.0.40
codegen_flags: <defaults>
</compile_context>

<pallas_src>
import jax
import jax.numpy as jnp
from jax.experimental import pallas as pl
from jax.experimental.pallas import tpu as pltpu


# Slab-path size gates (per batch).  Keep the (C, HW) slab (double-buffered by the
# pipeline) and the (P, HW) one-hot matrix comfortably inside VMEM -- sized with
# v7x in mind (64 MiB physical / 32 MiB default-scoped VMEM).
_SLAB_BYTES_MAX = 4 << 20
_ONEHOT_BYTES_MAX = 4 << 20


# --------------------------- in-kernel helpers ------------------------------

def _f16_roundtrip(x):
    """f32 -> nearest-float16 -> f32 (round-to-nearest-even), emulated in f32.

    Handles the three fp16 regimes for x >= 0 (x is an L2 norm):
      * normal range: RTNE to 10 mantissa bits via a uint32 bit trick,
      * subnormal range (x < 2^-14): quantize to multiples of 2^-24 (RTNE),
      * overflow (x >= 65520): +inf, as torch's .to(float16) would give.
    """
    u = pltpu.bitcast(x, jnp.uint32)
    keep_lsb = (u >> 13) & jnp.uint32(1)                      # tie-to-even
    r = pltpu.bitcast(
        (u + jnp.uint32(0x0FFF) + keep_lsb) & jnp.uint32(0xFFFFE000), jnp.float32)
    # Subnormal fp16: quantum is 2^-24.  x*2^24 < 2^10 here, so the magic-add
    # (v + 2^23) - 2^23 rounds to the nearest integer with ties-to-even exactly.
    sub = ((x * 16777216.0 + 8388608.0) - 8388608.0) * (2.0 ** -24)
    r = jnp.where(x < 6.103515625e-05, sub, r)
    # Overflow: largest finite fp16 is 65504; values >= 65520 round to +inf.
    r = jnp.where(x >= 65520.0, jnp.float32(jnp.inf), r)
    return r


def _l2_normalize_fp16(x):
    """Normalize(2) from the module: x / (float16(||x||_2) + 1e-7), in f32."""
    ss = jnp.sum(x * x, axis=-1, keepdims=True)
    norm = _f16_roundtrip(jnp.sqrt(ss))
    return x * pl.reciprocal(norm + 1e-7, approx=False)


def _onehot_gather(pid_ref, feat_ref):
    """Gather rows feat_ref[0, :, pid[p]] -> (P, C) with one MXU matmul.

    A (P, HW) one-hot matrix is built from a 2-D iota and contracted against the
    (C, HW) slab (A . B^T form, like flash-attention's QK^T), producing all P
    sampled rows at once -- no per-row DMA descriptors, no dynamic lane indexing.
    """
    P = pid_ref.shape[0]
    _, C, HW = feat_ref.shape
    pid = pid_ref[...]                                           # (P, 1) int32
    hw_iota = jax.lax.broadcasted_iota(jnp.int32, (P, HW), 1)
    onehot = jnp.where(hw_iota == pid, 1.0, 0.0).astype(jnp.float32)
    slab = feat_ref[0].astype(jnp.float32)                       # (C, HW)
    return jax.lax.dot_general(                                  # (P, C)
        onehot, slab, (((1,), (1,)), ((), ())),
        preferred_element_type=jnp.float32)


# ------------------------------ Pallas kernels ------------------------------

def _gather_l2norm_kernel(pid_ref, feat_ref, o_ref):
    """use_mlp=False path: one-hot gather + Normalize(2)."""
    x = _onehot_gather(pid_ref, feat_ref)                        # (P, C) f32
    o_ref[...] = _l2_normalize_fp16(x).astype(o_ref.dtype)


def _gather_mlp_l2norm_kernel(pid_ref, feat_ref, w1_ref, b1_ref, w2_ref, b2_ref,
                              o_ref):
    """use_mlp=True path: one-hot gather + Linear->ReLU->Linear + Normalize(2)."""
    x = _onehot_gather(pid_ref, feat_ref)                        # (P, Cin) f32
    h = jnp.dot(x, w1_ref[...], preferred_element_type=jnp.float32)
    h = jnp.maximum(h + b1_ref[...], 0.0)
    y = jnp.dot(h, w2_ref[...], preferred_element_type=jnp.float32)
    y = y + b2_ref[...]
    o_ref[...] = _l2_normalize_fp16(y).astype(o_ref.dtype)


# --------------------------- pallas_call wrappers ----------------------------

def _gather_l2norm(feat3, pid2):
    """feat3: (B, C, HW) NCHW-flat features; pid2: (P, 1) int32 patch ids."""
    B, C, HW = feat3.shape
    P = pid2.shape[0]
    return pl.pallas_call(
        _gather_l2norm_kernel,
        out_shape=jax.ShapeDtypeStruct((B * P, C), feat3.dtype),
        grid=(B,),
        in_specs=[
            pl.BlockSpec((P, 1), lambda b: (0, 0)),              # patch ids (resident)
            pl.BlockSpec((1, C, HW), lambda b: (b, 0, 0)),       # per-batch slab
        ],
        out_specs=pl.BlockSpec((P, C), lambda b: (b, 0)),        # flattened (B*P, C)
        compiler_params=pltpu.CompilerParams(
            dimension_semantics=("parallel",)),
    )(pid2, feat3)


def _gather_mlp_l2norm(feat3, pid2, w1, b1, w2, b2, out_dtype):
    B, C, HW = feat3.shape
    P = pid2.shape[0]
    nc = w1.shape[1]
    return pl.pallas_call(
        _gather_mlp_l2norm_kernel,
        out_shape=jax.ShapeDtypeStruct((B * P, nc), out_dtype),
        grid=(B,),
        in_specs=[
            pl.BlockSpec((P, 1), lambda b: (0, 0)),              # patch ids (resident)
            pl.BlockSpec((1, C, HW), lambda b: (b, 0, 0)),       # per-batch slab
            pl.BlockSpec((C, nc), lambda b: (0, 0)),             # w1 (resident)
            pl.BlockSpec((1, nc), lambda b: (0, 0)),             # b1
            pl.BlockSpec((nc, nc), lambda b: (0, 0)),            # w2
            pl.BlockSpec((1, nc), lambda b: (0, 0)),             # b2
        ],
        out_specs=pl.BlockSpec((P, nc), lambda b: (b, 0)),       # flattened (B*P, nc)
        compiler_params=pltpu.CompilerParams(
            dimension_semantics=("parallel",)),
    )(pid2, feat3, w1, b1, w2, b2)


# ------------------------------ forward (glue) -------------------------------

def patch_sample_f_forward(feats, num_patches=64, patch_ids=None,
                           mlps=None, rng_key=None):
    """JAX/Pallas equivalent of PatchSampleF.forward for 4-D feats, num_patches>0.

    feats:     list of (B, C, H, W) arrays.
    patch_ids: optional list of int32 index arrays (as in the PyTorch module).
    mlps:      None (use_mlp=False) or list of (w1, b1, w2, b2) with
               w1=(C, nc), b1=(nc,), w2=(nc, nc), b2=(nc,)  [w = torch weight.T].
    """
    if rng_key is None:
        rng_key = jax.random.PRNGKey(0)
    return_feats, return_ids = [], []
    for feat_id, feat in enumerate(feats):
        B, C, H, W = feat.shape
        HW = H * W
        if patch_ids is not None:
            patch_id = jnp.asarray(patch_ids[feat_id], dtype=jnp.int32)
        else:
            rng_key, sub = jax.random.split(rng_key)
            perm = jax.random.permutation(sub, HW)
            patch_id = perm[: min(num_patches, HW)].astype(jnp.int32)
        P = int(patch_id.shape[0])

        # Free reshape: NCHW -> (B, C, HW).  No HBM transpose of the full map.
        feat3 = feat.reshape(B, C, HW)

        if (C * HW * feat.dtype.itemsize > _SLAB_BYTES_MAX
                or 4 * P * HW > _ONEHOT_BYTES_MAX):
            # Large-map fallback: XLA gathers only the P needed columns (tiny
            # traffic, still no full-map transpose); the kernel then runs with
            # identity patch ids on the pre-gathered (B, C, P) slab.
            feat3 = jnp.take(feat3, patch_id, axis=2)
            pid_eff = jnp.arange(P, dtype=jnp.int32)
        else:
            pid_eff = patch_id

        pid2 = pid_eff.reshape(P, 1).astype(jnp.int32)
        if mlps is not None:
            w1, b1, w2, b2 = mlps[feat_id]
            out = _gather_mlp_l2norm(feat3, pid2,
                                     w1, b1.reshape(1, -1),
                                     w2, b2.reshape(1, -1), feat.dtype)
        else:
            out = _gather_l2norm(feat3, pid2)
        return_feats.append(out)                  # already flattened (B*P, C_out)
        return_ids.append(patch_id)
    return return_feats, return_ids


# ------------------------------ pure-JAX reference ---------------------------

def _ref_patch_sample(feat, patch_id, mlp=None):
    B, C, H, W = feat.shape
    rows = jnp.transpose(feat, (0, 2, 3, 1)).reshape(B, H * W, C)
    x = rows[:, patch_id, :].reshape(B * patch_id.shape[0], C).astype(jnp.float32)
    if mlp is not None:
        w1, b1, w2, b2 = mlp
        x = jnp.maximum(
            jnp.dot(x, w1, precision=jax.lax.Precision.HIGHEST) + b1, 0.0)
        x = jnp.dot(x, w2, precision=jax.lax.Precision.HIGHEST) + b2
    norm = jnp.sqrt(jnp.sum(x * x, axis=-1, keepdims=True)).astype(jnp.float16)
    return x / (norm + 1e-7)                      # fp16 norm, f32 divide (torch)


# ------------------------------------ main -----------------------------------

if __name__ == "__main__":
    key = jax.random.PRNGKey(0)
    k1, k2, kp, kw = jax.random.split(key, 4)

    # Two feature levels, as PatchSampleF receives a list of encoder features.
    feats = [
        jax.random.normal(k1, (2, 4, 16, 16), dtype=jnp.float32),
        jax.random.normal(k2, (2, 8, 8, 8), dtype=jnp.float32),
    ]
    num_patches = 64

    # Deterministic patch ids (the module also accepts precomputed patch_ids).
    patch_ids = []
    for i, f in enumerate(feats):
        hw = f.shape[2] * f.shape[3]
        perm = jax.random.permutation(jax.random.fold_in(kp, i), hw)
        patch_ids.append(perm[: min(num_patches, hw)].astype(jnp.int32))

    # ---- path 1: use_mlp=False (module default) ----------------------------
    outs, ids = patch_sample_f_forward(feats, num_patches, patch_ids)
    outs = [jax.block_until_ready(o) for o in outs]
    for o, f, pid in zip(outs, feats, patch_ids):
        ref = _ref_patch_sample(f, pid)
        assert o.shape == ref.shape
        # Tolerance covers the MXU f32 pass decomposition of the one-hot gather
        # (normally exact) plus the reciprocal-multiply vs. divide difference.
        assert jnp.allclose(o, ref, atol=5e-3, rtol=5e-3), "mismatch (no-mlp path)"

    # ---- path 2: use_mlp=True (create_mlp: Linear(C,nc)-ReLU-Linear(nc,nc)) --
    nc = 32
    mlps = []
    for i, f in enumerate(feats):
        cin = f.shape[1]
        ka, kb = jax.random.split(jax.random.fold_in(kw, i))
        # init_net(..., 'normal', init_gain=0.02): weights ~ N(0, 0.02), bias = 0.
        w1 = 0.02 * jax.random.normal(ka, (cin, nc), dtype=jnp.float32)
        w2 = 0.02 * jax.random.normal(kb, (nc, nc), dtype=jnp.float32)
        b1 = jnp.zeros((nc,), jnp.float32)
        b2 = jnp.zeros((nc,), jnp.float32)
        mlps.append((w1, b1, w2, b2))

    outs_mlp, _ = patch_sample_f_forward(feats, num_patches, patch_ids, mlps=mlps)
    outs_mlp = [jax.block_until_ready(o) for o in outs_mlp]
    for o, f, pid, mlp in zip(outs_mlp, feats, patch_ids, mlps):
        ref = _ref_patch_sample(f, pid, mlp)
        assert o.shape == ref.shape
        assert jnp.allclose(o, ref, atol=5e-3, rtol=5e-3), "mismatch (mlp path)"

    print("KERNEL_OK")
</pallas_src>

<mosaic_0001>
module attributes {stable_mosaic.version = 11 : i64} {
  func.func @_gather_l2norm_kernel(%arg0: i32, %arg1: memref<64x1xi32, #tpu.memory_space<vmem>>, %arg2: memref<1x4x256xf32, #tpu.memory_space<vmem>>, %arg3: memref<64x4xf32, #tpu.memory_space<vmem>>) attributes {dimension_semantics = [#tpu.dimension_semantics<parallel>], iteration_bounds = array<i64: 2>, scalar_prefetch = 0 : i64, scratch_operands = 0 : i64, tpu.core_type = #tpu.core_type<tc>, window_params = [{pipeline_mode = #tpu.pipeline_mode<synchronous>, transform_indices = @transform_0, window_bounds = array<i64: 64, 1>}, {transform_indices = @transform_1, window_bounds = array<i64: 1, 4, 256>}, {transform_indices = @transform_2, window_bounds = array<i64: 64, 4>}]} {
    %c0 = arith.constant 0 : index
    %c0_0 = arith.constant 0 : index
    %0 = vector.load %arg1[%c0, %c0_0] : memref<64x1xi32, #tpu.memory_space<vmem>>, vector<64x1xi32>
    %1 = tpu.iota {dimensions = array<i32: 1>} : vector<64x256xi32>
    %2 = vector.broadcast %0 : vector<64x1xi32> to vector<64x256xi32>
    %3 = arith.cmpi eq, %1, %2 : vector<64x256xi32>
    %cst = arith.constant 1.000000e+00 : f32
    %cst_1 = arith.constant 0.000000e+00 : f32
    %4 = vector.broadcast %cst : f32 to vector<64x256xf32>
    %5 = vector.broadcast %cst_1 : f32 to vector<64x256xf32>
    %6 = arith.select %3, %4, %5 : vector<64x256xi1>, vector<64x256xf32>
    %c0_2 = arith.constant 0 : index
    %c0_3 = arith.constant 0 : index
    %c0_4 = arith.constant 0 : index
    %7 = vector.load %arg2[%c0_2, %c0_3, %c0_4] : memref<1x4x256xf32, #tpu.memory_space<vmem>>, vector<1x4x256xf32>
    %8 = vector.shape_cast %7 : vector<1x4x256xf32> to vector<4x256xf32>
    %cst_5 = arith.constant dense<0.000000e+00> : vector<64x4xf32>
    %9 = tpu.matmul %6, %8, %cst_5 {dimension_numbers = #tpu.dot_dimension_numbers<[1], [1], [0], [0], [0, 0, 1, 0], [], []>} : vector<64x256xf32>, vector<4x256xf32>, vector<64x4xf32> -> vector<64x4xf32>
    %10 = arith.mulf %9, %9 : vector<64x4xf32>
    %cst_6 = arith.constant dense<0.000000e+00> : vector<64xf32>
    %11 = vector.multi_reduction <add>, %10, %cst_6 [1] : vector<64x4xf32> to vector<64xf32>
    %12 = vector.shape_cast %11 : vector<64xf32> to vector<64x1xf32>
    %13 = math.sqrt %12 : vector<64x1xf32>
    %14 = tpu.bitcast %13 : vector<64x1xf32> -> vector<64x1xi32>
    %c13_i32 = arith.constant 13 : i32
    %15 = vector.broadcast %c13_i32 : i32 to vector<64x1xi32>
    %16 = arith.shrui %14, %15 : vector<64x1xi32>
    %c1_i32 = arith.constant 1 : i32
    %17 = vector.broadcast %c1_i32 : i32 to vector<64x1xi32>
    %18 = arith.andi %16, %17 : vector<64x1xi32>
    %c4095_i32 = arith.constant 4095 : i32
    %19 = vector.broadcast %c4095_i32 : i32 to vector<64x1xi32>
    %20 = arith.addi %14, %19 : vector<64x1xi32>
    %21 = arith.addi %20, %18 : vector<64x1xi32>
    %c-8192_i32 = arith.constant -8192 : i32
    %22 = vector.broadcast %c-8192_i32 : i32 to vector<64x1xi32>
    %23 = arith.andi %21, %22 : vector<64x1xi32>
    %24 = tpu.bitcast %23 : vector<64x1xi32> -> vector<64x1xf32>
    %cst_7 = arith.constant 0x4B800000 : f32
    %25 = vector.broadcast %cst_7 : f32 to vector<64x1xf32>
    %26 = arith.mulf %13, %25 : vector<64x1xf32>
    %cst_8 = arith.constant 0x4B000000 : f32
    %27 = vector.broadcast %cst_8 : f32 to vector<64x1xf32>
    %28 = arith.addf %26, %27 : vector<64x1xf32>
    %cst_9 = arith.constant 0x4B000000 : f32
    %29 = vector.broadcast %cst_9 : f32 to vector<64x1xf32>
    %30 = arith.subf %28, %29 : vector<64x1xf32>
    %cst_10 = arith.constant 5.96046448E-8 : f32
    %31 = vector.broadcast %cst_10 : f32 to vector<64x1xf32>
    %32 = arith.mulf %30, %31 : vector<64x1xf32>
    %cst_11 = arith.constant 6.10351563E-5 : f32
    %33 = vector.broadcast %cst_11 : f32 to vector<64x1xf32>
    %34 = arith.cmpf olt, %13, %33 : vector<64x1xf32>
    %35 = arith.select %34, %32, %24 : vector<64x1xi1>, vector<64x1xf32>
    %cst_12 = arith.constant 6.552000e+04 : f32
    %36 = vector.broadcast %cst_12 : f32 to vector<64x1xf32>
    %37 = arith.cmpf oge, %13, %36 : vector<64x1xf32>
    %cst_13 = arith.constant 0x7F800000 : f32
    %38 = vector.broadcast %cst_13 : f32 to vector<64x1xf32>
    %39 = arith.select %37, %38, %35 : vector<64x1xi1>, vector<64x1xf32>
    %cst_14 = arith.constant 1.000000e-07 : f32
    %40 = vector.broadcast %cst_14 : f32 to vector<64x1xf32>
    %41 = arith.addf %39, %40 : vector<64x1xf32>
    %42 = tpu.reciprocal %41 : vector<64x1xf32> -> vector<64x1xf32>
    %43 = vector.broadcast %42 : vector<64x1xf32> to vector<64x4xf32>
    %44 = arith.mulf %9, %43 : vector<64x4xf32>
    %c0_15 = arith.constant 0 : index
    %c0_16 = arith.constant 0 : index
    %45 = vector.load %arg3[%c0_15, %c0_16] : memref<64x4xf32, #tpu.memory_space<vmem>>, vector<64x4xf32>
    tpu.vector_store %arg3[%c0_15, %c0_16], %44 {strides = array<i32>} : memref<64x4xf32, #tpu.memory_space<vmem>>, vector<64x4xf32>,
    return
  }
  func.func @transform_0(%arg0: i32) -> (i32, i32) {
    %c0_i32 = arith.constant 0 : i32
    %c0_i32_0 = arith.constant 0 : i32
    %c0_i32_1 = arith.constant 0 : i32
    return %c0_i32, %c0_i32_0 : i32, i32
  }
  func.func @transform_1(%arg0: i32) -> (i32, i32, i32) {
    %c0_i32 = arith.constant 0 : i32
    %c0_i32_0 = arith.constant 0 : i32
    %c0_i32_1 = arith.constant 0 : i32
    return %arg0, %c0_i32, %c0_i32_0 : i32, i32, i32
  }
  func.func @transform_2(%arg0: i32) -> (i32, i32) {
    %c0_i32 = arith.constant 0 : i32
    %c0_i32_0 = arith.constant 0 : i32
    return %arg0, %c0_i32 : i32, i32
  }
}

</mosaic_0001>

<llo_original>
// kernel: tpu_custom_call.1
$region0: #{tpu_custom_call.1}
  #allocation0 [shape = 'u32[]', space=smem, size = 0x4, offset = 0x4, fixed_abs, tag = 'smem constant byte address 0x4 - core index']
  #allocation1 [shape = 'u32[72,128]{1,0:T(1,128)}', space=vmem, size = 0x9000, scoped, tag = 'internal scratch']
  %s0 = inlined_call_operand.vmem [shape: s32[64,1], index: 0, kind: input, shape index: {}]
  %s1 = inlined_call_operand.vmem [shape: f32[2,4,256], index: 1, kind: input, shape index: {}]
  %s2 = inlined_call_operand.vmem [shape: f32[128,4], index: 2, kind: output, shape index: {}]
  %s3 = sld [smem:[#allocation0]]
  $region41: #{tpu_custom_call.1} parent=0
    _
  %s5 = ssub.s32 1, %s3
  %s6 = scalar_select 0, %s5, %s3
  loop: start=0, step=1, limit=4
  $region2: #{tpu_custom_call.1} parent=0 // loop_pre_header
    _
  $region3: #{tpu_custom_call.1} parent=0 // loop_header
    %s8 = sphi 0, %s12
    %p9 = scmp.ge.s32.totalorder %s8, 4
    %s16 = sphi 0, %s16
    %s18 = sphi 0, %s16
    %s19 = sphi 0, %s18
    %s33 = sphi 0, %s19
    %s39 = sphi 0, %s41
    %s42 = sphi 0, %s39
    %s43 = sphi 0, %s42
    %s59 = sphi 0, %s43
    %s65 = sphi 0, %s67
    %s68 = sphi 0, %s65
    %s69 = sphi 0, %s68
    %s85 = sphi 0, %s69
  $region4: #{tpu_custom_call.1} parent=0 // loop_header_branch
    %11 = sbr.rel (%p9) target = $region8
  $region5: #{tpu_custom_call.1} parent=0 // loop_body
    %s13 = ssub.s32 %s8, 1
    %s14 = ssub.s32 %s8, 2
    %s15 = sadd.s32 %s8, 1
    %s17 = sadd.s32 %s16, 1
    %p20 = scmp.eq.s32.totalorder %s8, 1
    %p21 = scmp.ne.s32.totalorder %s16, %s18
    %p22 = scmp.eq.s32.totalorder %s8, 0
    %p23 = por %p21, %p22
    %p24 = scmp.ne.s32.totalorder %s16, %s18
    %p25 = scmp.eq.s32.totalorder %s13, 1
    %p26 = por %p24, %p25
    %p27 = scmp.ne.s32.totalorder %s18, %s19
    %p28 = scmp.eq.s32.totalorder %s13, 0
    %p29 = por %p27, %p28
    %p30 = scmp.ne.s32.totalorder %s18, %s19
    %p31 = scmp.eq.s32.totalorder %s14, 1
    %p32 = por %p30, %p31
    %p34 = scmp.ne.s32.totalorder %s19, %s33
    %p35 = scmp.eq.s32.totalorder %s14, 0
    %p36 = por %p34, %p35
    %s37 = ssub.s32 %s8, %s15
    %p38 = scmp.eq.s32.totalorder %s37, 0
    %s40 = sadd.s32 %s39, 1
    %s41 = scalar_select %p38, %s39, %s40
    %p44 = pneg %p38
    %p45 = scmp.eq.s32.totalorder %s8, 1
    %p46 = por %p44, %p45
    %p47 = scmp.ne.s32.totalorder %s39, %s42
    %p48 = scmp.eq.s32.totalorder %s8, 0
    %p49 = por %p47, %p48
    %p50 = scmp.ne.s32.totalorder %s39, %s42
    %p51 = scmp.eq.s32.totalorder %s13, 1
    %p52 = por %p50, %p51
    %p53 = scmp.ne.s32.totalorder %s42, %s43
    %p54 = scmp.eq.s32.totalorder %s13, 0
    %p55 = por %p53, %p54
    %p56 = scmp.ne.s32.totalorder %s42, %s43
    %p57 = scmp.eq.s32.totalorder %s14, 1
    %p58 = por %p56, %p57
    %p60 = scmp.ne.s32.totalorder %s43, %s59
    %p61 = scmp.eq.s32.totalorder %s14, 0
    %p62 = por %p60, %p61
    %s63 = ssub.s32 %s8, %s15
    %p64 = scmp.eq.s32.totalorder %s63, 0
    %s66 = sadd.s32 %s65, 1
    %s67 = scalar_select %p64, %s65, %s66
    %p70 = pneg %p64
    %p71 = scmp.eq.s32.totalorder %s8, 1
    %p72 = por %p70, %p71
    %p73 = scmp.ne.s32.totalorder %s65, %s68
    %p74 = scmp.eq.s32.totalorder %s8, 0
    %p75 = por %p73, %p74
    %p76 = scmp.ne.s32.totalorder %s65, %s68
    %p77 = scmp.eq.s32.totalorder %s13, 1
    %p78 = por %p76, %p77
    %p79 = scmp.ne.s32.totalorder %s68, %s69
    %p80 = scmp.eq.s32.totalorder %s13, 0
    %p81 = por %p79, %p80
    %p82 = scmp.ne.s32.totalorder %s68, %s69
    %p83 = scmp.eq.s32.totalorder %s14, 1
    %p84 = por %p82, %p83
    %p86 = scmp.ne.s32.totalorder %s69, %s85
    %p87 = scmp.eq.s32.totalorder %s14, 0
    %p88 = por %p86, %p87
    %p89 = scmp.le.s32.totalorder 1, %s8
    %p90 = scmp.lt.s32.totalorder %s8, 3
    %p91 = pnand %p89, %p90
    %p92 = pneg %p91
    // Predicated region
    $region9: #{tpu_custom_call.1} parent=5 // pred_check
      _
    $region10: #{tpu_custom_call.1} parent=5 // pred_check_branch
      %94 = sbr.rel (%p91) target = $region12
    $region11: #{tpu_custom_call.1} parent=5 // pred_region
      %s95 = ssub.s32 %s8, 1
      // Predicated region
      $region13: #{tpu_custom_call.1} parent=11 // pred_check
        %p96 = pneg %p29
      $region14: #{tpu_custom_call.1} parent=11 // pred_check_branch
        %98 = sbr.rel (%p96) target = $region16
      $region15: #{tpu_custom_call.1} parent=11 // pred_region
        _
      $region16: #{tpu_custom_call.1} parent=11 // pred_fallthru
        _
    $region12: #{tpu_custom_call.1} parent=5 // pred_fallthru
      _
    %p99 = scmp.lt.s32.totalorder %s8, 2
    // Predicated region
    $region17: #{tpu_custom_call.1} parent=5 // pred_check
      %p100 = pneg %p99
    $region18: #{tpu_custom_call.1} parent=5 // pred_check_branch
      %102 = sbr.rel (%p100) target = $region20
    $region19: #{tpu_custom_call.1} parent=5 // pred_region
      // Predicated region
      $region21: #{tpu_custom_call.1} parent=19 // pred_check
        %p103 = pneg %p49
      $region22: #{tpu_custom_call.1} parent=19 // pred_check_branch
        %105 = sbr.rel (%p103) target = $region24
      $region23: #{tpu_custom_call.1} parent=19 // pred_region
        %p106 = scmp.lt.s32.totalorder %s8, 1
        %s107 = scalar_select %p106, %s8, 1
        %s108 = smul.addr %s107, 2
        %s109 = smul.addr %s108, 4
        %s110 = scalar_lea.vmem %s1, %s109
      $region24: #{tpu_custom_call.1} parent=19 // pred_fallthru
        _
    $region20: #{tpu_custom_call.1} parent=5 // pred_fallthru
      _
    %p111 = scmp.le.s32.totalorder 1, %s8
    %p112 = scmp.lt.s32.totalorder %s8, 3
    %p113 = pnand %p111, %p112
    %p114 = pneg %p113
    // Predicated region
    $region25: #{tpu_custom_call.1} parent=5 // pred_check
      _
    $region26: #{tpu_custom_call.1} parent=5 // pred_check_branch
      %116 = sbr.rel (%p113) target = $region28
    $region27: #{tpu_custom_call.1} parent=5 // pred_region
      %s117 = ssub.s32 %s8, 1
      %p118 = pneg %p29
      %p119 = pneg %p26
      %p120 = scmp.lt.s32.totalorder %s13, 1
      %s121 = scalar_select %p120, %s13, 1
      %s122 = smul.addr %s121, 2
      %s123 = smul.addr %s122, 4
      %s124 = scalar_lea.vmem %s1, %s123
      %p125 = pneg %p55
      %p126 = pneg %p52
      %p127 = pneg %p81
      %p128 = pneg %p78
      %s129 = smul.u32 8, %s13
      %p130 = scmp.lt.s32.totalorder %s129, 15
      %s131 = scalar_select %p130, %s129, 15
      %s132 = smul.addr %s131, 8
      %s133 = scalar_lea.vmem %s2, %s132
      %p134 = scmp.lt.s32.totalorder %s13, 1
      %s135 = scalar_select %p134, %s13, 1
      %s136 = smul.addr %s135, 2
      %s137 = smul.addr %s136, 4
      %s138 = scalar_lea.vmem %s1, %s137
      %s139 = smul.u32 8, %s13
      %p140 = scmp.lt.s32.totalorder %s139, 15
      %s141 = scalar_select %p140, %s139, 15
      %s142 = smul.addr %s141, 8
      %s143 = scalar_lea.vmem %s2, %s142
      %s144 = smul.u32 8, %s13
      %v145 = vld [vmem:[%s0] sm:$0xff]
      %v146 = vld [vmem:[%s0 + $0x8] sm:$0xff]
      %v147 = vld [vmem:[%s0 + $0x10] sm:$0xff]
      %v148 = vld [vmem:[%s0 + $0x18] sm:$0xff]
      %v149 = vld [vmem:[%s0 + $0x20] sm:$0xff]
      %v150 = vld [vmem:[%s0 + $0x28] sm:$0xff]
      %v151 = vld [vmem:[%s0 + $0x30] sm:$0xff]
      %v152 = vld [vmem:[%s0 + $0x38] sm:$0xff]
      %v153 = vlaneseq
      %v154 = vand.u32 %v153, 127
      %v155 = vadd.s32 %v154, 128
      %156 = vset.pattern.permute.xlu0 0
      %157 = vperm.xlu0 %156, %v145
      %v158 = vpop.permute.xlu0 %157
      %159 = vset.pattern.permute.xlu0 0
      %160 = vperm.xlu0 %159, %v146
      %v161 = vpop.permute.xlu0 %160
      %162 = vset.pattern.permute.xlu0 0
      %163 = vperm.xlu0 %162, %v147
      %v164 = vpop.permute.xlu0 %163
      %165 = vset.pattern.permute.xlu0 0
      %166 = vperm.xlu0 %165, %v148
      %v167 = vpop.permute.xlu0 %166
      %168 = vset.pattern.permute.xlu0 0
      %169 = vperm.xlu0 %168, %v149
      %v170 = vpop.permute.xlu0 %169
      %171 = vset.pattern.permute.xlu0 0
      %172 = vperm.xlu0 %171, %v150
      %v173 = vpop.permute.xlu0 %172
      %174 = vset.pattern.permute.xlu0 0
      %175 = vperm.xlu0 %174, %v151
      %v176 = vpop.permute.xlu0 %175
      %177 = vset.pattern.permute.xlu0 0
      %178 = vperm.xlu0 %177, %v152
      %v179 = vpop.permute.xlu0 %178
      %vm180 = vcmp.eq.s32.totalorder %v154, %v158
      %vm181 = vcmp.eq.s32.totalorder %v155, %v158
      %vm182 = vcmp.eq.s32.totalorder %v154, %v161
      %vm183 = vcmp.eq.s32.totalorder %v155, %v161
      %vm184 = vcmp.eq.s32.totalorder %v154, %v164
      %vm185 = vcmp.eq.s32.totalorder %v155, %v164
      %vm186 = vcmp.eq.s32.totalorder %v154, %v167
      %vm187 = vcmp.eq.s32.totalorder %v155, %v167
      %vm188 = vcmp.eq.s32.totalorder %v154, %v170
      %vm189 = vcmp.eq.s32.totalorder %v155, %v170
      %vm190 = vcmp.eq.s32.totalorder %v154, %v173
      %vm191 = vcmp.eq.s32.totalorder %v155, %v173
      %vm192 = vcmp.eq.s32.totalorder %v154, %v176
      %vm193 = vcmp.eq.s32.totalorder %v155, %v176
      %vm194 = vcmp.eq.s32.totalorder %v154, %v179
      %vm195 = vcmp.eq.s32.totalorder %v155, %v179
      %v196 = vsel %vm180, 1.0, 0.0
      %v197 = vsel %vm181, 1.0, 0.0
      %v198 = vsel %vm182, 1.0, 0.0
      %v199 = vsel %vm183, 1.0, 0.0
      %v200 = vsel %vm184, 1.0, 0.0
      %v201 = vsel %vm185, 1.0, 0.0
      %v202 = vsel %vm186, 1.0, 0.0
      %v203 = vsel %vm187, 1.0, 0.0
      %v204 = vsel %vm188, 1.0, 0.0
      %v205 = vsel %vm189, 1.0, 0.0
      %v206 = vsel %vm190, 1.0, 0.0
      %v207 = vsel %vm191, 1.0, 0.0
      %v208 = vsel %vm192, 1.0, 0.0
      %v209 = vsel %vm193, 1.0, 0.0
      %v210 = vsel %vm194, 1.0, 0.0
      %v211 = vsel %vm195, 1.0, 0.0
      %v212 = vld [vmem:[%s138] sm:$0xff]
      %214 = vst [vmem:[#allocation1] ss:$2 sm:$0xff] %v212
      %v215 = vld.sshfl [vmem:[#allocation1] sm:$0xff pattern:$0x75316420]
      %v216 = vld.sshfl [vmem:[#allocation1 + $0x8] sm:$0xff pattern:$0x75316420]
      %219 = vmatpush.xpose.msra.mxu0 0.0
      %220 = vmatpush.xpose.msra.mxu0 0.0
      %221 = vmatpush.xpose.msra.mxu0 0.0
      %222 = vmatpush.xpose.msra.mxu0 0.0
      %223 = vmatpush.xpose.msra.mxu0 0.0
      %224 = vmatpush.xpose.msra.mxu0 0.0
      %225 = vmatpush.xpose.msra.mxu0 0.0
      %226 = vmatpush.xpose.msra.mxu0 0.0
      %227 = vmatpush.xpose.msra.mxu0 0.0
      %228 = vmatpush.xpose.msra.mxu0 0.0
      %229 = vmatpush.xpose.msra.mxu0 0.0
      %230 = vmatpush.xpose.msra.mxu0 0.0
      %231 = vmatpush.xpose.msra.mxu0 0.0
      %232 = vmatpush.xpose.msra.mxu0 0.0
      %233 = vmatpush.xpose.msra.mxu0 0.0
      %234 = vmatpush.xpose.msra.mxu0 %v215
      %235 = vmatmul.f32.gmra.mxu0 %v196
      %v236 = vpop.f32.mrf.mxu0
      %v237 = vadd.f32 0.0, %v236
      %238 = vmatmul.f32.gmra.mxu0 %v198
      %v239 = vpop.f32.mrf.mxu0
      %v240 = vadd.f32 0.0, %v239
      %241 = vmatmul.f32.gmra.mxu0 %v200
      %v242 = vpop.f32.mrf.mxu0
      %v243 = vadd.f32 0.0, %v242
      %244 = vmatmul.f32.gmra.mxu0 %v202
      %v245 = vpop.f32.mrf.mxu0
      %v246 = vadd.f32 0.0, %v245
      %247 = vmatmul.f32.gmra.mxu0 %v204
      %v248 = vpop.f32.mrf.mxu0
      %v249 = vadd.f32 0.0, %v248
      %250 = vmatmul.f32.gmra.mxu0 %v206
      %v251 = vpop.f32.mrf.mxu0
      %v252 = vadd.f32 0.0, %v251
      %253 = vmatmul.f32.gmra.mxu0 %v208
      %v254 = vpop.f32.mrf.mxu0
      %v255 = vadd.f32 0.0, %v254
      %256 = vmatmul.f32.gmra.mxu0 %v210
      %v257 = vpop.f32.mrf.mxu0
      %v258 = vadd.f32 0.0, %v257
      %259 = vdwg.mxu0
      %260 = vmatpush.xpose.msra.mxu0 0.0
      %261 = vmatpush.xpose.msra.mxu0 0.0
      %262 = vmatpush.xpose.msra.mxu0 0.0
      %263 = vmatpush.xpose.msra.mxu0 0.0
      %264 = vmatpush.xpose.msra.mxu0 0.0
      %265 = vmatpush.xpose.msra.mxu0 0.0
      %266 = vmatpush.xpose.msra.mxu0 0.0
      %267 = vmatpush.xpose.msra.mxu0 0.0
      %268 = vmatpush.xpose.msra.mxu0 0.0
      %269 = vmatpush.xpose.msra.mxu0 0.0
      %270 = vmatpush.xpose.msra.mxu0 0.0
      %271 = vmatpush.xpose.msra.mxu0 0.0
      %272 = vmatpush.xpose.msra.mxu0 0.0
      %273 = vmatpush.xpose.msra.mxu0 0.0
      %274 = vmatpush.xpose.msra.mxu0 0.0
      %275 = vmatpush.xpose.msra.mxu0 %v216
      %276 = vmatmul.f32.gmra.mxu0 %v197
      %v277 = vpop.f32.mrf.mxu0
      %v278 = vadd.f32 %v237, %v277
      %279 = vmatmul.f32.gmra.mxu0 %v199
      %v280 = vpop.f32.mrf.mxu0
      %v281 = vadd.f32 %v240, %v280
      %282 = vmatmul.f32.gmra.mxu0 %v201
      %v283 = vpop.f32.mrf.mxu0
      %v284 = vadd.f32 %v243, %v283
      %285 = vmatmul.f32.gmra.mxu0 %v203
      %v286 = vpop.f32.mrf.mxu0
      %v287 = vadd.f32 %v246, %v286
      %288 = vmatmul.f32.gmra.mxu0 %v205
      %v289 = vpop.f32.mrf.mxu0
      %v290 = vadd.f32 %v249, %v289
      %291 = vmatmul.f32.gmra.mxu0 %v207
      %v292 = vpop.f32.mrf.mxu0
      %v293 = vadd.f32 %v252, %v292
      %294 = vmatmul.f32.gmra.mxu0 %v209
      %v295 = vpop.f32.mrf.mxu0
      %v296 = vadd.f32 %v255, %v295
      %297 = vmatmul.f32.gmra.mxu0 %v211
      %v298 = vpop.f32.mrf.mxu0
      %v299 = vadd.f32 %v258, %v298
      %300 = vdwg.mxu0
      %v301 = vmul.f32 %v278, %v278
      %v302 = vmul.f32 %v281, %v281
      %v303 = vmul.f32 %v284, %v284
      %v304 = vmul.f32 %v287, %v287
      %v305 = vmul.f32 %v290, %v290
      %v306 = vmul.f32 %v293, %v293
      %v307 = vmul.f32 %v296, %v296
      %v308 = vmul.f32 %v299, %v299
      %vm309 = vcmask 31744
      %v310 = vsel %vm309, %v301, 0.0
      %311 = vadd.xlane.f32.xlu0 %v310
      %v312 = vpop.xlane.xlu0 %311
      %v313 = vsel %vm309, %v302, 0.0
      %314 = vadd.xlane.f32.xlu0 %v313
      %v315 = vpop.xlane.xlu0 %314
      %v316 = vsel %vm309, %v303, 0.0
      %317 = vadd.xlane.f32.xlu0 %v316
      %v318 = vpop.xlane.xlu0 %317
      %v319 = vsel %vm309, %v304, 0.0
      %320 = vadd.xlane.f32.xlu0 %v319
      %v321 = vpop.xlane.xlu0 %320
      %v322 = vsel %vm309, %v305, 0.0
      %323 = vadd.xlane.f32.xlu0 %v322
      %v324 = vpop.xlane.xlu0 %323
      %v325 = vsel %vm309, %v306, 0.0
      %326 = vadd.xlane.f32.xlu0 %v325
      %v327 = vpop.xlane.xlu0 %326
      %v328 = vsel %vm309, %v307, 0.0
      %329 = vadd.xlane.f32.xlu0 %v328
      %v330 = vpop.xlane.xlu0 %329
      %v331 = vsel %vm309, %v308, 0.0
      %332 = vadd.xlane.f32.xlu0 %v331
      %v333 = vpop.xlane.xlu0 %332
      %v334 = vrsqrt.pop %v312
      %v335 = vmul.f32 %v334, %v312
      %v336 = vmul.f32 %v335, %v334
      %v337 = vmul.f32 0.5, %v336
      %v338 = vsub.f32 1.5, %v337
      %v339 = vmul.f32 %v334, %v338
      %v340 = vmul.f32 %v312, %v339
      %vm341 = vcmp.eq.f32.partialorder %v312, inf
      %v342 = vsel %vm341, %v312, %v340
      %vm343 = vcmp.eq.f32.partialorder %v312, 0.0
      %v344 = vand.u32 %v312, 2147483648
      %v345 = vsel %vm343, %v344, %v342
      %v346 = vrsqrt.pop %v315
      %v347 = vmul.f32 %v346, %v315
      %v348 = vmul.f32 %v347, %v346
      %v349 = vmul.f32 0.5, %v348
      %v350 = vsub.f32 1.5, %v349
      %v351 = vmul.f32 %v346, %v350
      %v352 = vmul.f32 %v315, %v351
      %vm353 = vcmp.eq.f32.partialorder %v315, inf
      %v354 = vsel %vm353, %v315, %v352
      %vm355 = vcmp.eq.f32.partialorder %v315, 0.0
      %v356 = vand.u32 %v315, 2147483648
      %v357 = vsel %vm355, %v356, %v354
      %v358 = vrsqrt.pop %v318
      %v359 = vmul.f32 %v358, %v318
      %v360 = vmul.f32 %v359, %v358
      %v361 = vmul.f32 0.5, %v360
      %v362 = vsub.f32 1.5, %v361
      %v363 = vmul.f32 %v358, %v362
      %v364 = vmul.f32 %v318, %v363
      %vm365 = vcmp.eq.f32.partialorder %v318, inf
      %v366 = vsel %vm365, %v318, %v364
      %vm367 = vcmp.eq.f32.partialorder %v318, 0.0
      %v368 = vand.u32 %v318, 2147483648
      %v369 = vsel %vm367, %v368, %v366
      %v370 = vrsqrt.pop %v321
      %v371 = vmul.f32 %v370, %v321
      %v372 = vmul.f32 %v371, %v370
      %v373 = vmul.f32 0.5, %v372
      %v374 = vsub.f32 1.5, %v373
      %v375 = vmul.f32 %v370, %v374
      %v376 = vmul.f32 %v321, %v375
      %vm377 = vcmp.eq.f32.partialorder %v321, inf
      %v378 = vsel %vm377, %v321, %v376
      %vm379 = vcmp.eq.f32.partialorder %v321, 0.0
      %v380 = vand.u32 %v321, 2147483648
      %v381 = vsel %vm379, %v380, %v378
      %v382 = vrsqrt.pop %v324
      %v383 = vmul.f32 %v382, %v324
      %v384 = vmul.f32 %v383, %v382
      %v385 = vmul.f32 0.5, %v384
      %v386 = vsub.f32 1.5, %v385
      %v387 = vmul.f32 %v382, %v386
      %v388 = vmul.f32 %v324, %v387
      %vm389 = vcmp.eq.f32.partialorder %v324, inf
      %v390 = vsel %vm389, %v324, %v388
      %vm391 = vcmp.eq.f32.partialorder %v324, 0.0
      %v392 = vand.u32 %v324, 2147483648
      %v393 = vsel %vm391, %v392, %v390
      %v394 = vrsqrt.pop %v327
      %v395 = vmul.f32 %v394, %v327
      %v396 = vmul.f32 %v395, %v394
      %v397 = vmul.f32 0.5, %v396
      %v398 = vsub.f32 1.5, %v397
      %v399 = vmul.f32 %v394, %v398
      %v400 = vmul.f32 %v327, %v399
      %vm401 = vcmp.eq.f32.partialorder %v327, inf
      %v402 = vsel %vm401, %v327, %v400
      %vm403 = vcmp.eq.f32.partialorder %v327, 0.0
      %v404 = vand.u32 %v327, 2147483648
      %v405 = vsel %vm403, %v404, %v402
      %v406 = vrsqrt.pop %v330
      %v407 = vmul.f32 %v406, %v330
      %v408 = vmul.f32 %v407, %v406
      %v409 = vmul.f32 0.5, %v408
      %v410 = vsub.f32 1.5, %v409
      %v411 = vmul.f32 %v406, %v410
      %v412 = vmul.f32 %v330, %v411
      %vm413 = vcmp.eq.f32.partialorder %v330, inf
      %v414 = vsel %vm413, %v330, %v412
      %vm415 = vcmp.eq.f32.partialorder %v330, 0.0
      %v416 = vand.u32 %v330, 2147483648
      %v417 = vsel %vm415, %v416, %v414
      %v418 = vrsqrt.pop %v333
      %v419 = vmul.f32 %v418, %v333
      %v420 = vmul.f32 %v419, %v418
      %v421 = vmul.f32 0.5, %v420
      %v422 = vsub.f32 1.5, %v421
      %v423 = vmul.f32 %v418, %v422
      %v424 = vmul.f32 %v333, %v423
      %vm425 = vcmp.eq.f32.partialorder %v333, inf
      %v426 = vsel %vm425, %v333, %v424
      %vm427 = vcmp.eq.f32.partialorder %v333, 0.0
      %v428 = vand.u32 %v333, 2147483648
      %v429 = vsel %vm427, %v428, %v426
      %v438 = vshrl.u32 %v345, 13
      %v439 = vshrl.u32 %v357, 13
      %v440 = vshrl.u32 %v369, 13
      %v441 = vshrl.u32 %v381, 13
      %v442 = vshrl.u32 %v393, 13
      %v443 = vshrl.u32 %v405, 13
      %v444 = vshrl.u32 %v417, 13
      %v445 = vshrl.u32 %v429, 13
      %v446 = vand.u32 %v438, 1
      %v447 = vand.u32 %v439, 1
      %v448 = vand.u32 %v440, 1
      %v449 = vand.u32 %v441, 1
      %v450 = vand.u32 %v442, 1
      %v451 = vand.u32 %v443, 1
      %v452 = vand.u32 %v444, 1
      %v453 = vand.u32 %v445, 1
      %v454 = vadd.s32 %v345, 4095
      %v455 = vadd.s32 %v357, 4095
      %v456 = vadd.s32 %v369, 4095
      %v457 = vadd.s32 %v381, 4095
      %v458 = vadd.s32 %v393, 4095
      %v459 = vadd.s32 %v405, 4095
      %v460 = vadd.s32 %v417, 4095
      %v461 = vadd.s32 %v429, 4095
      %v462 = vadd.s32 %v454, %v446
      %v463 = vadd.s32 %v455, %v447
      %v464 = vadd.s32 %v456, %v448
      %v465 = vadd.s32 %v457, %v449
      %v466 = vadd.s32 %v458, %v450
      %v467 = vadd.s32 %v459, %v451
      %v468 = vadd.s32 %v460, %v452
      %v469 = vadd.s32 %v461, %v453
      %v470 = vand.u32 %v462, 4294959104
      %v471 = vand.u32 %v463, 4294959104
      %v472 = vand.u32 %v464, 4294959104
      %v473 = vand.u32 %v465, 4294959104
      %v474 = vand.u32 %v466, 4294959104
      %v475 = vand.u32 %v467, 4294959104
      %v476 = vand.u32 %v468, 4294959104
      %v477 = vand.u32 %v469, 4294959104
      %v486 = vmul.f32 %v345, 16777216.0
      %v487 = vmul.f32 %v357, 16777216.0
      %v488 = vmul.f32 %v369, 16777216.0
      %v489 = vmul.f32 %v381, 16777216.0
      %v490 = vmul.f32 %v393, 16777216.0
      %v491 = vmul.f32 %v405, 16777216.0
      %v492 = vmul.f32 %v417, 16777216.0
      %v493 = vmul.f32 %v429, 16777216.0
      %v494 = vadd.f32 %v486, 8388608.0
      %v495 = vadd.f32 %v487, 8388608.0
      %v496 = vadd.f32 %v488, 8388608.0
      %v497 = vadd.f32 %v489, 8388608.0
      %v498 = vadd.f32 %v490, 8388608.0
      %v499 = vadd.f32 %v491, 8388608.0
      %v500 = vadd.f32 %v492, 8388608.0
      %v501 = vadd.f32 %v493, 8388608.0
      %v502 = vsub.f32 %v494, 8388608.0
      %v503 = vsub.f32 %v495, 8388608.0
      %v504 = vsub.f32 %v496, 8388608.0
      %v505 = vsub.f32 %v497, 8388608.0
      %v506 = vsub.f32 %v498, 8388608.0
      %v507 = vsub.f32 %v499, 8388608.0
      %v508 = vsub.f32 %v500, 8388608.0
      %v509 = vsub.f32 %v501, 8388608.0
      %v510 = vmul.f32 %v502, 5.9604645e-08
      %v511 = vmul.f32 %v503, 5.9604645e-08
      %v512 = vmul.f32 %v504, 5.9604645e-08
      %v513 = vmul.f32 %v505, 5.9604645e-08
      %v514 = vmul.f32 %v506, 5.9604645e-08
      %v515 = vmul.f32 %v507, 5.9604645e-08
      %v516 = vmul.f32 %v508, 5.9604645e-08
      %v517 = vmul.f32 %v509, 5.9604645e-08
      %vm518 = vcmp.lt.f32.partialorder %v345, 6.1035156e-05
      %vm519 = vcmp.lt.f32.partialorder %v357, 6.1035156e-05
      %vm520 = vcmp.lt.f32.partialorder %v369, 6.1035156e-05
      %vm521 = vcmp.lt.f32.partialorder %v381, 6.1035156e-05
      %vm522 = vcmp.lt.f32.partialorder %v393, 6.1035156e-05
      %vm523 = vcmp.lt.f32.partialorder %v405, 6.1035156e-05
      %vm524 = vcmp.lt.f32.partialorder %v417, 6.1035156e-05
      %vm525 = vcmp.lt.f32.partialorder %v429, 6.1035156e-05
      %v526 = vsel %vm518, %v510, %v470
      %v527 = vsel %vm519, %v511, %v471
      %v528 = vsel %vm520, %v512, %v472
      %v529 = vsel %vm521, %v513, %v473
      %v530 = vsel %vm522, %v514, %v474
      %v531 = vsel %vm523, %v515, %v475
      %v532 = vsel %vm524, %v516, %v476
      %v533 = vsel %vm525, %v517, %v477
      %vm534 = vcmp.ge.f32.partialorder %v345, 65520.0
      %vm535 = vcmp.ge.f32.partialorder %v357, 65520.0
      %vm536 = vcmp.ge.f32.partialorder %v369, 65520.0
      %vm537 = vcmp.ge.f32.partialorder %v381, 65520.0
      %vm538 = vcmp.ge.f32.partialorder %v393, 65520.0
      %vm539 = vcmp.ge.f32.partialorder %v405, 65520.0
      %vm540 = vcmp.ge.f32.partialorder %v417, 65520.0
      %vm541 = vcmp.ge.f32.partialorder %v429, 65520.0
      %v542 = vsel %vm534, inf, %v526
      %v543 = vsel %vm535, inf, %v527
      %v544 = vsel %vm536, inf, %v528
      %v545 = vsel %vm537, inf, %v529
      %v546 = vsel %vm538, inf, %v530
      %v547 = vsel %vm539, inf, %v531
      %v548 = vsel %vm540, inf, %v532
      %v549 = vsel %vm541, inf, %v533
      %v550 = vadd.f32 %v542, 1e-07
      %v551 = vadd.f32 %v543, 1e-07
      %v552 = vadd.f32 %v544, 1e-07
      %v553 = vadd.f32 %v545, 1e-07
      %v554 = vadd.f32 %v546, 1e-07
      %v555 = vadd.f32 %v547, 1e-07
      %v556 = vadd.f32 %v548, 1e-07
      %v557 = vadd.f32 %v549, 1e-07
      %v558 = vrcp.pop %v550
      %v559 = vmul.f32 %v550, %v558
      %v560 = vsub.f32 1.0, %v559
      %v561 = vmul.f32 %v558, %v560
      %v562 = vadd.f32 %v558, %v561
      %vm563 = vweird.f32 %v550
      %vm564 = vweird.f32 %v558
      %vm565 = vmor %vm563, %vm564
      %v566 = vsel %vm565, %v558, %v562
      %v567 = vand.u32 2147483647, %v550
      %vm568 = vcmp.eq.f32.partialorder %v567, 8.507059e+37
      %v569 = vand.u32 %v550, 2147483648
      %v570 = vor.u32 1.1754944e-38, %v569
      %v571 = vsel %vm568, %v570, %v566
      %v572 = vrcp.pop %v551
      %v573 = vmul.f32 %v551, %v572
      %v574 = vsub.f32 1.0, %v573
      %v575 = vmul.f32 %v572, %v574
      %v576 = vadd.f32 %v572, %v575
      %vm577 = vweird.f32 %v551
      %vm578 = vweird.f32 %v572
      %vm579 = vmor %vm577, %vm578
      %v580 = vsel %vm579, %v572, %v576
      %v581 = vand.u32 2147483647, %v551
      %vm582 = vcmp.eq.f32.partialorder %v581, 8.507059e+37
      %v583 = vand.u32 %v551, 2147483648
      %v584 = vor.u32 1.1754944e-38, %v583
      %v585 = vsel %vm582, %v584, %v580
      %v586 = vrcp.pop %v552
      %v587 = vmul.f32 %v552, %v586
      %v588 = vsub.f32 1.0, %v587
      %v589 = vmul.f32 %v586, %v588
      %v590 = vadd.f32 %v586, %v589
      %vm591 = vweird.f32 %v552
      %vm592 = vweird.f32 %v586
      %vm593 = vmor %vm591, %vm592
      %v594 = vsel %vm593, %v586, %v590
      %v595 = vand.u32 2147483647, %v552
      %vm596 = vcmp.eq.f32.partialorder %v595, 8.507059e+37
      %v597 = vand.u32 %v552, 2147483648
      %v598 = vor.u32 1.1754944e-38, %v597
      %v599 = vsel %vm596, %v598, %v594
      %v600 = vrcp.pop %v553
      %v601 = vmul.f32 %v553, %v600
      %v602 = vsub.f32 1.0, %v601
      %v603 = vmul.f32 %v600, %v602
      %v604 = vadd.f32 %v600, %v603
      %vm605 = vweird.f32 %v553
      %vm606 = vweird.f32 %v600
      %vm607 = vmor %vm605, %vm606
      %v608 = vsel %vm607, %v600, %v604
      %v609 = vand.u32 2147483647, %v553
      %vm610 = vcmp.eq.f32.partialorder %v609, 8.507059e+37
      %v611 = vand.u32 %v553, 2147483648
      %v612 = vor.u32 1.1754944e-38, %v611
      %v613 = vsel %vm610, %v612, %v608
      %v614 = vrcp.pop %v554
      %v615 = vmul.f32 %v554, %v614
      %v616 = vsub.f32 1.0, %v615
      %v617 = vmul.f32 %v614, %v616
      %v618 = vadd.f32 %v614, %v617
      %vm619 = vweird.f32 %v554
      %vm620 = vweird.f32 %v614
      %vm621 = vmor %vm619, %vm620
      %v622 = vsel %vm621, %v614, %v618
      %v623 = vand.u32 2147483647, %v554
      %vm624 = vcmp.eq.f32.partialorder %v623, 8.507059e+37
      %v625 = vand.u32 %v554, 2147483648
      %v626 = vor.u32 1.1754944e-38, %v625
      %v627 = vsel %vm624, %v626, %v622
      %v628 = vrcp.pop %v555
      %v629 = vmul.f32 %v555, %v628
      %v630 = vsub.f32 1.0, %v629
      %v631 = vmul.f32 %v628, %v630
      %v632 = vadd.f32 %v628, %v631
      %vm633 = vweird.f32 %v555
      %vm634 = vweird.f32 %v628
      %vm635 = vmor %vm633, %vm634
      %v636 = vsel %vm635, %v628, %v632
      %v637 = vand.u32 2147483647, %v555
      %vm638 = vcmp.eq.f32.partialorder %v637, 8.507059e+37
      %v639 = vand.u32 %v555, 2147483648
      %v640 = vor.u32 1.1754944e-38, %v639
      %v641 = vsel %vm638, %v640, %v636
      %v642 = vrcp.pop %v556
      %v643 = vmul.f32 %v556, %v642
      %v644 = vsub.f32 1.0, %v643
      %v645 = vmul.f32 %v642, %v644
      %v646 = vadd.f32 %v642, %v645
      %vm647 = vweird.f32 %v556
      %vm648 = vweird.f32 %v642
      %vm649 = vmor %vm647, %vm648
      %v650 = vsel %vm649, %v642, %v646
      %v651 = vand.u32 2147483647, %v556
      %vm652 = vcmp.eq.f32.partialorder %v651, 8.507059e+37
      %v653 = vand.u32 %v556, 2147483648
      %v654 = vor.u32 1.1754944e-38, %v653
      %v655 = vsel %vm652, %v654, %v650
      %v656 = vrcp.pop %v557
      %v657 = vmul.f32 %v557, %v656
      %v658 = vsub.f32 1.0, %v657
      %v659 = vmul.f32 %v656, %v658
      %v660 = vadd.f32 %v656, %v659
      %vm661 = vweird.f32 %v557
      %vm662 = vweird.f32 %v656
      %vm663 = vmor %vm661, %vm662
      %v664 = vsel %vm663, %v656, %v660
      %v665 = vand.u32 2147483647, %v557
      %vm666 = vcmp.eq.f32.partialorder %v665, 8.507059e+37
      %v667 = vand.u32 %v557, 2147483648
      %v668 = vor.u32 1.1754944e-38, %v667
      %v669 = vsel %vm666, %v668, %v664
      %v670 = vmul.f32 %v278, %v571
      %v671 = vmul.f32 %v281, %v585
      %v672 = vmul.f32 %v284, %v599
      %v673 = vmul.f32 %v287, %v613
      %v674 = vmul.f32 %v290, %v627
      %v675 = vmul.f32 %v293, %v641
      %v676 = vmul.f32 %v296, %v655
      %v677 = vmul.f32 %v299, %v669
      %678 = vst.msk [vmem:[%s143] sm:$0xff] %vm309, %v670
      %679 = vst.msk [vmem:[%s143 + $0x8] sm:$0xff] %vm309, %v671
      %680 = vst.msk [vmem:[%s143 + $0x10] sm:$0xff] %vm309, %v672
      %681 = vst.msk [vmem:[%s143 + $0x18] sm:$0xff] %vm309, %v673
      %682 = vst.msk [vmem:[%s143 + $0x20] sm:$0xff] %vm309, %v674
      %683 = vst.msk [vmem:[%s143 + $0x28] sm:$0xff] %vm309, %v675
      %684 = vst.msk [vmem:[%s143 + $0x30] sm:$0xff] %vm309, %v676
      %685 = vst.msk [vmem:[%s143 + $0x38] sm:$0xff] %vm309, %v677
      %s686 = smul.u32 8, %s13
      %p687 = scmp.lt.s32.totalorder %s686, 15
      %s688 = scalar_select %p687, %s686, 15
      %s689 = smul.addr %s688, 8
      %s690 = scalar_lea.vmem %s2, %s689
      // Predicated region
      $region29: #{tpu_custom_call.1} parent=27 // pred_check
        %p691 = pneg %p78
      $region30: #{tpu_custom_call.1} parent=27 // pred_check_branch
        %693 = sbr.rel (%p691) target = $region32
      $region31: #{tpu_custom_call.1} parent=27 // pred_region
        %s694 = smul.u32 8, %s13
      $region32: #{tpu_custom_call.1} parent=27 // pred_fallthru
        _
    $region28: #{tpu_custom_call.1} parent=5 // pred_fallthru
      _
    %p695 = scmp.le.s32.totalorder 2, %s8
    // Predicated region
    $region33: #{tpu_custom_call.1} parent=5 // pred_check
      %p696 = pneg %p695
    $region34: #{tpu_custom_call.1} parent=5 // pred_check_branch
      %698 = sbr.rel (%p696) target = $region36
    $region35: #{tpu_custom_call.1} parent=5 // pred_region
      %s699 = ssub.s32 %s8, 2
      // Predicated region
      $region37: #{tpu_custom_call.1} parent=35 // pred_check
        %p700 = pneg %p84
      $region38: #{tpu_custom_call.1} parent=35 // pred_check_branch
        %702 = sbr.rel (%p700) target = $region40
      $region39: #{tpu_custom_call.1} parent=35 // pred_region
        %s703 = smul.u32 8, %s14
        %p704 = scmp.lt.s32.totalorder %s703, 15
        %s705 = scalar_select %p704, %s703, 15
        %s706 = smul.addr %s705, 8
        %s707 = scalar_lea.vmem %s2, %s706
      $region40: #{tpu_custom_call.1} parent=35 // pred_fallthru
        _
    $region36: #{tpu_custom_call.1} parent=5 // pred_fallthru
      _
  $region6: #{tpu_custom_call.1} parent=0 // loop_footer
    %s12 = sadd.s32 1, %s8
  $region7: #{tpu_custom_call.1} parent=0 // loop_footer_branch
    %7 = sbr.rel target = $region3
  $region8: #{tpu_custom_call.1} parent=0 // loop_exit
    _

</llo_original>
